<compile_context>
chip_gen: v7x
topology: tpu7x:2x2x1
jax: 0.10.0
libtpu: 0.0.40
codegen_flags: <defaults>
</compile_context>

<pallas_src>
import functools
import math

import jax
import jax.numpy as jnp
from jax import lax
from jax.experimental import pallas as pl
from jax.experimental.pallas import tpu as pltpu

COMPUTE_DTYPE = jnp.bfloat16        # MXU operand dtype; accumulation stays f32
_NEG_FILL = -1e30                   # finite masked_fill value (avoids NaN rows)
# Conservative VMEM cap: leaves headroom below v7x's 64 MiB physical VMEM while
# still comfortably inside v5e/v6e's 128 MiB.
_VMEM_LIMIT = 48 * 1024 * 1024
# Keep projection weights fully VMEM-resident (no K/N tiling) while their total
# bf16 footprint stays small relative to the VMEM budget.
_RESIDENT_WEIGHT_BYTES = 12 * 1024 * 1024


# ------------------------------ helpers ----------------------------------- #

def _pick_tile(dim, target, aligns=(128, 8)):
    """Largest tile <= target that evenly divides `dim`, preferring coarse
    alignment.  Falls back to the full dim (always a legal block)."""
    if dim <= target:
        return dim
    for align in aligns:
        t = (target // align) * align
        while t >= align:
            if dim % t == 0:
                return t
            t -= align
    # TODO(synk): padded/masked edge tiles instead of whole-dim fallback.
    return dim


# ----------------------- resident-weight fused linear ---------------------- #

def _make_resident_linear_kernel(n_out):
    def kernel(*refs):
        x_ref = refs[0]
        w_refs = refs[1:1 + n_out]
        b_refs = refs[1 + n_out:1 + 2 * n_out]
        o_refs = refs[1 + 2 * n_out:]
        x = x_ref[...]                      # activation tile read once
        for w_ref, b_ref, o_ref in zip(w_refs, b_refs, o_refs):
            y = jnp.dot(x, w_ref[...], preferred_element_type=jnp.float32)
            o_ref[...] = (y + b_ref[...]).astype(o_ref.dtype)
    return kernel


def _linear_resident(x2, w_list, b_list, out_dtype):
    """y_i = x2 @ w_i + b_i with every w_i/b_i fully VMEM-resident.
    x2: (M, K); w_i: (K, N_i); b_i: (1, N_i) f32.  grid = (M//tm,)."""
    M, K = x2.shape
    n = len(w_list)
    tm = _pick_tile(M, 512, (128, 8))

    in_specs = [pl.BlockSpec((tm, K), lambda i: (i, 0))]
    in_specs += [pl.BlockSpec(w.shape, lambda i: (0, 0)) for w in w_list]
    in_specs += [pl.BlockSpec(b.shape, lambda i: (0, 0)) for b in b_list]
    out_shape = tuple(jax.ShapeDtypeStruct((M, w.shape[1]), out_dtype)
                      for w in w_list)
    out_specs = tuple(pl.BlockSpec((tm, w.shape[1]), lambda i: (i, 0))
                      for w in w_list)

    flops = sum(2 * M * K * w.shape[1] for w in w_list)
    bytes_acc = (x2.size * x2.dtype.itemsize
                 + sum(w.size * w.dtype.itemsize for w in w_list)
                 + sum(M * w.shape[1] * jnp.dtype(out_dtype).itemsize
                       for w in w_list))

    res = pl.pallas_call(
        _make_resident_linear_kernel(n),
        out_shape=out_shape,
        grid=(M // tm,),
        in_specs=in_specs,
        out_specs=out_specs,
        compiler_params=pltpu.CompilerParams(
            dimension_semantics=("parallel",),
            vmem_limit_bytes=_VMEM_LIMIT),
        cost_estimate=pl.CostEstimate(
            flops=int(flops), transcendentals=0, bytes_accessed=int(bytes_acc)),
    )(x2, *w_list, *b_list)
    return list(res)


# --------------------------- K-tiled linear fallback ------------------------ #

def _ktiled_linear_kernel(x_ref, w_ref, b_ref, o_ref, acc_ref):
    @pl.when(pl.program_id(2) == 0)
    def _():
        acc_ref[...] = jnp.zeros_like(acc_ref)

    acc_ref[...] += jnp.dot(x_ref[...], w_ref[...],
                            preferred_element_type=jnp.float32)

    @pl.when(pl.program_id(2) == pl.num_programs(2) - 1)
    def _():
        o_ref[...] = (acc_ref[...] + b_ref[...]).astype(o_ref.dtype)


def _linear_ktiled(x2, w_t, b2, out_dtype):
    M, K = x2.shape
    N = w_t.shape[1]
    tm = _pick_tile(M, 512, (128, 8))
    tn = _pick_tile(N, 512, (256, 128))
    tk = _pick_tile(K, 1024, (256, 128))
    return pl.pallas_call(
        _ktiled_linear_kernel,
        out_shape=jax.ShapeDtypeStruct((M, N), out_dtype),
        grid=(M // tm, N // tn, K // tk),
        in_specs=[
            pl.BlockSpec((tm, tk), lambda i, j, kk: (i, kk)),
            pl.BlockSpec((tk, tn), lambda i, j, kk: (kk, j)),
            pl.BlockSpec((1, tn), lambda i, j, kk: (0, j)),
        ],
        out_specs=pl.BlockSpec((tm, tn), lambda i, j, kk: (i, j)),
        scratch_shapes=[pltpu.VMEM((tm, tn), jnp.float32)],
        compiler_params=pltpu.CompilerParams(
            dimension_semantics=("parallel", "parallel", "arbitrary"),
            vmem_limit_bytes=_VMEM_LIMIT),
        cost_estimate=pl.CostEstimate(
            flops=2 * M * N * K, transcendentals=0,
            bytes_accessed=int(x2.size * x2.dtype.itemsize
                               + w_t.size * w_t.dtype.itemsize
                               + M * N * jnp.dtype(out_dtype).itemsize)),
    )(x2, w_t, b2)


def fused_linear(x, weights_and_biases, *, out_dtype=None,
                 compute_dtype=COMPUTE_DTYPE):
    """Apply several linear layers to the same activation with ONE read of x.
    x: (B, S, K) f32/bf16.  weights_and_biases: list of (w_t (K, N_i) f32,
    b (N_i,) f32).  Returns a list of (B, S, N_i) arrays in out_dtype."""
    B, S, K = x.shape
    out_dtype = out_dtype or x.dtype
    M = B * S
    x2 = x.reshape(M, K).astype(compute_dtype)
    w_list = [w.astype(compute_dtype) for w, _ in weights_and_biases]
    b_list = [b.reshape(1, -1).astype(jnp.float32) for _, b in weights_and_biases]

    w_bytes = sum(w.size * w.dtype.itemsize for w in w_list)
    if w_bytes <= _RESIDENT_WEIGHT_BYTES:
        outs = _linear_resident(x2, w_list, b_list, out_dtype)
    else:
        outs = [_linear_ktiled(x2, w, b, out_dtype)
                for w, b in zip(w_list, b_list)]
    return [o.reshape(B, S, o.shape[1]) for o in outs]


# ------------------------------ attention kernel --------------------------- #

def _make_attn_kernel(h, d_k, has_mask, return_attn):
    def impl(q_ref, k_ref, v_ref, mask_ref, o_ref, p_ref):
        q = q_ref[0]                     # (tq, d_model)   compute dtype
        k = k_ref[0]                     # (S_kv, d_model) compute dtype
        v = v_ref[0]                     # (S_kv, d_model) compute dtype
        bias = None
        if mask_ref is not None:
            # Additive mask bias computed ONCE per grid step (hoisted out of
            # the head loop): one int8 compare + select, no per-head converts.
            bias = jnp.where(mask_ref[0] == 0,
                             jnp.float32(_NEG_FILL), jnp.float32(0.0))
        for head in range(h):            # static unroll; heads are lane slices
            lo = head * d_k
            # QK^T by contracting the d_k dims directly (no in-kernel transpose).
            # Q was pre-scaled by 1/sqrt(d_k) via the weight fold.
            s = lax.dot_general(q[:, lo:lo + d_k], k[:, lo:lo + d_k],
                                (((1,), (1,)), ((), ())),
                                preferred_element_type=jnp.float32)
            if bias is not None:
                s = s + bias
            m = jnp.max(s, axis=-1, keepdims=True)
            e = jnp.exp(s - m)
            denom = jnp.sum(e, axis=-1, keepdims=True)
            if return_attn:
                p = e / denom            # exact normalization for returned p_attn
                p_ref[0, head] = p.astype(p_ref.dtype)
            else:
                p = e * pl.reciprocal(denom, approx=True)   # EUP, not VALU
            # Per-head write (no concat): each head's PV result retires as soon
            # as its matmul finishes; HBM writeback block stays d_model-wide.
            o_ref[0, :, lo:lo + d_k] = jnp.dot(
                p.astype(v.dtype), v[:, lo:lo + d_k],
                preferred_element_type=jnp.float32).astype(o_ref.dtype)

    if has_mask and return_attn:
        def kernel(q_ref, k_ref, v_ref, mask_ref, o_ref, p_ref):
            impl(q_ref, k_ref, v_ref, mask_ref, o_ref, p_ref)
    elif has_mask:
        def kernel(q_ref, k_ref, v_ref, mask_ref, o_ref):
            impl(q_ref, k_ref, v_ref, mask_ref, o_ref, None)
    elif return_attn:
        def kernel(q_ref, k_ref, v_ref, o_ref, p_ref):
            impl(q_ref, k_ref, v_ref, None, o_ref, p_ref)
    else:
        def kernel(q_ref, k_ref, v_ref, o_ref):
            impl(q_ref, k_ref, v_ref, None, o_ref, None)
    return kernel


def _attention(q, k, v, mask_i8, *, h, return_attn, out_dtype):
    """q: (B, S_q, d_model), k/v: (B, S_kv, d_model), mask_i8: (1|B, S_q, S_kv)
    or None.  grid = (B, S_q//tq); K/V stay VMEM-resident across query tiles."""
    B, S_q, d_model = q.shape
    S_kv = k.shape[1]
    d_k = d_model // h
    tq = _pick_tile(S_q, 256, (8,))
    has_mask = mask_i8 is not None

    q_map = lambda b, qi: (b, qi, 0)
    kv_map = lambda b, qi: (b, 0, 0)        # constant across qi -> resident

    arrays = [q, k, v]
    in_specs = [
        pl.BlockSpec((1, tq, d_model), q_map),
        pl.BlockSpec((1, S_kv, d_model), kv_map),
        pl.BlockSpec((1, S_kv, d_model), kv_map),
    ]
    if has_mask:
        if mask_i8.shape[0] == 1:           # batch-invariant mask, no HBM bcast
            m_map = lambda b, qi: (0, qi, 0)
        else:
            m_map = lambda b, qi: (b, qi, 0)
        arrays.append(mask_i8)
        in_specs.append(pl.BlockSpec((1, tq, S_kv), m_map))

    out_shape = jax.ShapeDtypeStruct((B, S_q, d_model), out_dtype)
    out_specs = pl.BlockSpec((1, tq, d_model), q_map)
    if return_attn:
        # bf16 p_attn halves the O(B*h*S^2) writeback and its VMEM block.
        out_shape = (out_shape,
                     jax.ShapeDtypeStruct((B, h, S_q, S_kv), jnp.bfloat16))
        out_specs = (out_specs,
                     pl.BlockSpec((1, h, tq, S_kv), lambda b, qi: (b, 0, qi, 0)))

    bytes_acc = ((q.size + k.size + v.size) * q.dtype.itemsize
                 + (mask_i8.size if has_mask else 0)
                 + B * S_q * d_model * jnp.dtype(out_dtype).itemsize
                 + (B * h * S_q * S_kv * 2 if return_attn else 0))

    res = pl.pallas_call(
        _make_attn_kernel(h, d_k, has_mask, return_attn),
        out_shape=out_shape,
        grid=(B, S_q // tq),
        in_specs=in_specs,
        out_specs=out_specs,
        compiler_params=pltpu.CompilerParams(
            dimension_semantics=("parallel", "parallel"),
            vmem_limit_bytes=_VMEM_LIMIT),
        cost_estimate=pl.CostEstimate(
            flops=4 * B * h * S_q * S_kv * d_k,
            transcendentals=B * h * S_q * S_kv,
            bytes_accessed=int(bytes_acc)),
    )(*arrays)

    if return_attn:
        return res[0], res[1]
    return res, None


# ------------------------------- MHA forward ------------------------------- #

def init_mha_params(key, d_model):
    """Deterministic init mimicking nn.Linear default U(-1/sqrt(in), 1/sqrt(in))."""
    bound = 1.0 / math.sqrt(d_model)
    names = ["q", "k", "v", "o"]
    params = {}
    keys = jax.random.split(key, 2 * len(names))
    for i, n in enumerate(names):
        params["w" + n] = jax.random.uniform(
            keys[2 * i], (d_model, d_model), jnp.float32, -bound, bound)
        params["b" + n] = jax.random.uniform(
            keys[2 * i + 1], (d_model,), jnp.float32, -bound, bound)
    return params


def _prep_mask(mask, B, S_q, S_kv):
    """Mask -> int8 (1|B, S_q, S_kv); keeps the batch dim at 1 when possible."""
    if mask is None:
        return None
    m = (mask != 0).astype(jnp.int8)
    if m.ndim == 2:
        m = m[None]
    mb = 1 if m.shape[0] == 1 else B
    return jnp.broadcast_to(m, (mb, S_q, S_kv))


def multi_headed_attention(params, query, key, value, mask=None, *, h,
                           return_attn=False, compute_dtype=COMPUTE_DTYPE):
    B, S_q, d_model = query.shape
    S_kv = key.shape[1]
    assert d_model % h == 0
    d_k = d_model // h
    scale = 1.0 / math.sqrt(d_k)
    cdt = compute_dtype

    mask_i8 = _prep_mask(mask, B, S_q, S_kv)

    # Fold 1/sqrt(d_k) into the Q weights/bias (no S^2 divides in the kernel).
    wq_s, bq_s = params["wq"].T * scale, params["bq"] * scale
    wk_t, bk = params["wk"].T, params["bk"]
    wv_t, bv = params["wv"].T, params["bv"]

    if (key is query) and (value is query):
        # Fused QKV: one pass over the activation, three resident weights.
        q, k, v = fused_linear(query, [(wq_s, bq_s), (wk_t, bk), (wv_t, bv)],
                               out_dtype=cdt, compute_dtype=cdt)
    else:
        (q,) = fused_linear(query, [(wq_s, bq_s)],
                            out_dtype=cdt, compute_dtype=cdt)
        if key is value:
            # Fused KV: one pass over the shared key/value activation.
            k, v = fused_linear(key, [(wk_t, bk), (wv_t, bv)],
                                out_dtype=cdt, compute_dtype=cdt)
        else:
            (k,) = fused_linear(key, [(wk_t, bk)],
                                out_dtype=cdt, compute_dtype=cdt)
            (v,) = fused_linear(value, [(wv_t, bv)],
                                out_dtype=cdt, compute_dtype=cdt)

    x, p_attn = _attention(q, k, v, mask_i8, h=h,
                           return_attn=return_attn, out_dtype=cdt)

    (out,) = fused_linear(x, [(params["wo"].T, params["bo"])],
                          out_dtype=query.dtype, compute_dtype=cdt)
    return (out, p_attn) if return_attn else out


# -------------------------------- reference -------------------------------- #

def _reference_mha(params, query, key, value, mask, h):
    B, S_q, d_model = query.shape
    S_kv = key.shape[1]
    d_k = d_model // h

    def lin(x, w, b):
        return x @ w.T + b

    def split(x, S):
        return x.reshape(B, S, h, d_k).transpose(0, 2, 1, 3)

    q = split(lin(query, params["wq"], params["bq"]), S_q)
    k = split(lin(key, params["wk"], params["bk"]), S_kv)
    v = split(lin(value, params["wv"], params["bv"]), S_kv)
    scores = jnp.einsum("bhqd,bhkd->bhqk", q, k) / math.sqrt(d_k)
    if mask is not None:
        scores = jnp.where(mask[:, None, :, :] == 0, -jnp.inf, scores)
    p = jax.nn.softmax(scores, axis=-1)
    x = jnp.einsum("bhqk,bhkd->bhqd", p, v)
    x = x.transpose(0, 2, 1, 3).reshape(B, S_q, d_model)
    return lin(x, params["wo"], params["bo"]), p


# ---------------------------------- main ----------------------------------- #

if __name__ == "__main__":
    B, S, d_model, h = 2, 8, 32, 4

    root = jax.random.PRNGKey(0)
    k_params, k_x, k_k, k_v = jax.random.split(root, 4)
    params = init_mha_params(k_params, d_model)

    # --- self-attention, causal mask (fused-QKV path), with p_attn output ---
    x = jax.random.normal(k_x, (B, S, d_model), jnp.float32)
    mask = jnp.tril(jnp.ones((S, S), jnp.float32))[None].repeat(B, axis=0)

    out, p_attn = multi_headed_attention(params, x, x, x, mask, h=h,
                                         return_attn=True)
    out = jax.block_until_ready(out)
    p_attn = jax.block_until_ready(p_attn)
    ref_out, ref_p = _reference_mha(params, x, x, x, mask, h)
    assert out.shape == (B, S, d_model)
    assert p_attn.shape == (B, h, S, S)
    assert jnp.allclose(out, ref_out, rtol=2e-2, atol=2e-2)
    assert jnp.allclose(p_attn.astype(jnp.float32), ref_p, rtol=2e-2, atol=2e-2)

    # --- fast path: no p_attn HBM writeback, approx-reciprocal softmax ---
    out_fast = jax.block_until_ready(
        multi_headed_attention(params, x, x, x, mask, h=h))
    assert jnp.allclose(out_fast, ref_out, rtol=2e-2, atol=2e-2)

    # --- cross-attention, shared key/value activation (fused-KV path), no mask ---
    S_kv = 16
    kv_in = jax.random.normal(k_k, (B, S_kv, d_model), jnp.float32)
    out_kv = jax.block_until_ready(
        multi_headed_attention(params, x, kv_in, kv_in, None, h=h))
    ref_kv, _ = _reference_mha(params, x, kv_in, kv_in, None, h)
    assert jnp.allclose(out_kv, ref_kv, rtol=2e-2, atol=2e-2)

    # --- cross-attention with distinct key/value arrays ---
    v_in = jax.random.normal(k_v, (B, S_kv, d_model), jnp.float32)
    out_x = jax.block_until_ready(
        multi_headed_attention(params, x, kv_in, v_in, None, h=h))
    ref_x, _ = _reference_mha(params, x, kv_in, v_in, None, h)
    assert jnp.allclose(out_x, ref_x, rtol=2e-2, atol=2e-2)

    print("KERNEL_OK")
</pallas_src>

<mosaic_0001>
module attributes {stable_mosaic.version = 11 : i64} {
  func.func @kernel(%arg0: i32, %arg1: memref<16x32xbf16, #tpu.memory_space<vmem>>, %arg2: memref<32x32xbf16, #tpu.memory_space<vmem>>, %arg3: memref<32x32xbf16, #tpu.memory_space<vmem>>, %arg4: memref<32x32xbf16, #tpu.memory_space<vmem>>, %arg5: memref<1x32xf32, #tpu.memory_space<vmem>>, %arg6: memref<1x32xf32, #tpu.memory_space<vmem>>, %arg7: memref<1x32xf32, #tpu.memory_space<vmem>>, %arg8: memref<16x32xbf16, #tpu.memory_space<vmem>>, %arg9: memref<16x32xbf16, #tpu.memory_space<vmem>>, %arg10: memref<16x32xbf16, #tpu.memory_space<vmem>>) attributes {dimension_semantics = [#tpu.dimension_semantics<parallel>], iteration_bounds = array<i64: 1>, scalar_prefetch = 0 : i64, scratch_operands = 0 : i64, tpu.core_type = #tpu.core_type<tc>, window_params = [{transform_indices = @transform_0, window_bounds = array<i64: 16, 32>}, {pipeline_mode = #tpu.pipeline_mode<synchronous>, transform_indices = @transform_1, window_bounds = array<i64: 32, 32>}, {pipeline_mode = #tpu.pipeline_mode<synchronous>, transform_indices = @transform_2, window_bounds = array<i64: 32, 32>}, {pipeline_mode = #tpu.pipeline_mode<synchronous>, transform_indices = @transform_3, window_bounds = array<i64: 32, 32>}, {pipeline_mode = #tpu.pipeline_mode<synchronous>, transform_indices = @transform_4, window_bounds = array<i64: 1, 32>}, {pipeline_mode = #tpu.pipeline_mode<synchronous>, transform_indices = @transform_5, window_bounds = array<i64: 1, 32>}, {pipeline_mode = #tpu.pipeline_mode<synchronous>, transform_indices = @transform_6, window_bounds = array<i64: 1, 32>}, {transform_indices = @transform_7, window_bounds = array<i64: 16, 32>}, {transform_indices = @transform_8, window_bounds = array<i64: 16, 32>}, {transform_indices = @transform_9, window_bounds = array<i64: 16, 32>}]} {
    %c0 = arith.constant 0 : index
    %c0_0 = arith.constant 0 : index
    %0 = vector.load %arg1[%c0, %c0_0] : memref<16x32xbf16, #tpu.memory_space<vmem>>, vector<16x32xbf16>
    %c0_1 = arith.constant 0 : index
    %c0_2 = arith.constant 0 : index
    %1 = vector.load %arg2[%c0_1, %c0_2] : memref<32x32xbf16, #tpu.memory_space<vmem>>, vector<32x32xbf16>
    %cst = arith.constant dense<0.000000e+00> : vector<16x32xf32>
    %2 = tpu.matmul %0, %1, %cst {dimension_numbers = #tpu.dot_dimension_numbers<[1], [0], [0], [1], [0, 0, 1, 1], [], []>} : vector<16x32xbf16>, vector<32x32xbf16>, vector<16x32xf32> -> vector<16x32xf32>
    %c0_3 = arith.constant 0 : index
    %c0_4 = arith.constant 0 : index
    %3 = vector.load %arg5[%c0_3, %c0_4] : memref<1x32xf32, #tpu.memory_space<vmem>>, vector<1x32xf32>
    %4 = vector.broadcast %3 : vector<1x32xf32> to vector<16x32xf32>
    %5 = arith.addf %2, %4 : vector<16x32xf32>
    %6 = arith.truncf %5 : vector<16x32xf32> to vector<16x32xbf16>
    %c0_5 = arith.constant 0 : index
    %c0_6 = arith.constant 0 : index
    %7 = vector.load %arg8[%c0_5, %c0_6] : memref<16x32xbf16, #tpu.memory_space<vmem>>, vector<16x32xbf16>
    tpu.vector_store %arg8[%c0_5, %c0_6], %6 {strides = array<i32>} : memref<16x32xbf16, #tpu.memory_space<vmem>>, vector<16x32xbf16>,
    %c0_7 = arith.constant 0 : index
    %c0_8 = arith.constant 0 : index
    %8 = vector.load %arg3[%c0_7, %c0_8] : memref<32x32xbf16, #tpu.memory_space<vmem>>, vector<32x32xbf16>
    %cst_9 = arith.constant dense<0.000000e+00> : vector<16x32xf32>
    %9 = tpu.matmul %0, %8, %cst_9 {dimension_numbers = #tpu.dot_dimension_numbers<[1], [0], [0], [1], [0, 0, 1, 1], [], []>} : vector<16x32xbf16>, vector<32x32xbf16>, vector<16x32xf32> -> vector<16x32xf32>
    %c0_10 = arith.constant 0 : index
    %c0_11 = arith.constant 0 : index
    %10 = vector.load %arg6[%c0_10, %c0_11] : memref<1x32xf32, #tpu.memory_space<vmem>>, vector<1x32xf32>
    %11 = vector.broadcast %10 : vector<1x32xf32> to vector<16x32xf32>
    %12 = arith.addf %9, %11 : vector<16x32xf32>
    %13 = arith.truncf %12 : vector<16x32xf32> to vector<16x32xbf16>
    %c0_12 = arith.constant 0 : index
    %c0_13 = arith.constant 0 : index
    %14 = vector.load %arg9[%c0_12, %c0_13] : memref<16x32xbf16, #tpu.memory_space<vmem>>, vector<16x32xbf16>
    tpu.vector_store %arg9[%c0_12, %c0_13], %13 {strides = array<i32>} : memref<16x32xbf16, #tpu.memory_space<vmem>>, vector<16x32xbf16>,
    %c0_14 = arith.constant 0 : index
    %c0_15 = arith.constant 0 : index
    %15 = vector.load %arg4[%c0_14, %c0_15] : memref<32x32xbf16, #tpu.memory_space<vmem>>, vector<32x32xbf16>
    %cst_16 = arith.constant dense<0.000000e+00> : vector<16x32xf32>
    %16 = tpu.matmul %0, %15, %cst_16 {dimension_numbers = #tpu.dot_dimension_numbers<[1], [0], [0], [1], [0, 0, 1, 1], [], []>} : vector<16x32xbf16>, vector<32x32xbf16>, vector<16x32xf32> -> vector<16x32xf32>
    %c0_17 = arith.constant 0 : index
    %c0_18 = arith.constant 0 : index
    %17 = vector.load %arg7[%c0_17, %c0_18] : memref<1x32xf32, #tpu.memory_space<vmem>>, vector<1x32xf32>
    %18 = vector.broadcast %17 : vector<1x32xf32> to vector<16x32xf32>
    %19 = arith.addf %16, %18 : vector<16x32xf32>
    %20 = arith.truncf %19 : vector<16x32xf32> to vector<16x32xbf16>
    %c0_19 = arith.constant 0 : index
    %c0_20 = arith.constant 0 : index
    %21 = vector.load %arg10[%c0_19, %c0_20] : memref<16x32xbf16, #tpu.memory_space<vmem>>, vector<16x32xbf16>
    tpu.vector_store %arg10[%c0_19, %c0_20], %20 {strides = array<i32>} : memref<16x32xbf16, #tpu.memory_space<vmem>>, vector<16x32xbf16>,
    return
  }
  func.func @transform_0(%arg0: i32) -> (i32, i32) {
    %c0_i32 = arith.constant 0 : i32
    %c0_i32_0 = arith.constant 0 : i32
    return %arg0, %c0_i32 : i32, i32
  }
  func.func @transform_1(%arg0: i32) -> (i32, i32) {
    %c0_i32 = arith.constant 0 : i32
    %c0_i32_0 = arith.constant 0 : i32
    %c0_i32_1 = arith.constant 0 : i32
    return %c0_i32, %c0_i32_0 : i32, i32
  }
  func.func @transform_2(%arg0: i32) -> (i32, i32) {
    %c0_i32 = arith.constant 0 : i32
    %c0_i32_0 = arith.constant 0 : i32
    %c0_i32_1 = arith.constant 0 : i32
    return %c0_i32, %c0_i32_0 : i32, i32
  }
  func.func @transform_3(%arg0: i32) -> (i32, i32) {
    %c0_i32 = arith.constant 0 : i32
    %c0_i32_0 = arith.constant 0 : i32
    %c0_i32_1 = arith.constant 0 : i32
    return %c0_i32, %c0_i32_0 : i32, i32
  }
  func.func @transform_4(%arg0: i32) -> (i32, i32) {
    %c0_i32 = arith.constant 0 : i32
    %c0_i32_0 = arith.constant 0 : i32
    %c0_i32_1 = arith.constant 0 : i32
    return %c0_i32, %c0_i32_0 : i32, i32
  }
  func.func @transform_5(%arg0: i32) -> (i32, i32) {
    %c0_i32 = arith.constant 0 : i32
    %c0_i32_0 = arith.constant 0 : i32
    %c0_i32_1 = arith.constant 0 : i32
    return %c0_i32, %c0_i32_0 : i32, i32
  }
  func.func @transform_6(%arg0: i32) -> (i32, i32) {
    %c0_i32 = arith.constant 0 : i32
    %c0_i32_0 = arith.constant 0 : i32
    %c0_i32_1 = arith.constant 0 : i32
    return %c0_i32, %c0_i32_0 : i32, i32
  }
  func.func @transform_7(%arg0: i32) -> (i32, i32) {
    %c0_i32 = arith.constant 0 : i32
    %c0_i32_0 = arith.constant 0 : i32
    return %arg0, %c0_i32 : i32, i32
  }
  func.func @transform_8(%arg0: i32) -> (i32, i32) {
    %c0_i32 = arith.constant 0 : i32
    %c0_i32_0 = arith.constant 0 : i32
    return %arg0, %c0_i32 : i32, i32
  }
  func.func @transform_9(%arg0: i32) -> (i32, i32) {
    %c0_i32 = arith.constant 0 : i32
    %c0_i32_0 = arith.constant 0 : i32
    return %arg0, %c0_i32 : i32, i32
  }
}

</mosaic_0001>

<llo_original>
// kernel: tpu_custom_call.1
$region0: #{tpu_custom_call.1}
  #allocation0 [shape = 'u32[]', space=smem, size = 0x4, offset = 0x4, fixed_abs, tag = 'smem constant byte address 0x4 - core index']
  #allocation1 [shape = 'u32[144,128]{1,0:T(1,128)}', space=vmem, size = 0x12000, scoped, tag = 'internal scratch']
  %s0 = inlined_call_operand.hbm [shape: bf16[16,32], index: 0, kind: input, shape index: {}]
  %s1 = inlined_call_operand.hbm [shape: bf16[32,32], index: 1, kind: input, shape index: {}]
  %s2 = inlined_call_operand.hbm [shape: bf16[32,32], index: 2, kind: input, shape index: {}]
  %s3 = inlined_call_operand.hbm [shape: bf16[32,32], index: 3, kind: input, shape index: {}]
  %s4 = inlined_call_operand.vmem [shape: f32[1,32], index: 4, kind: input, shape index: {}]
  %s5 = inlined_call_operand.vmem [shape: f32[1,32], index: 5, kind: input, shape index: {}]
  %s6 = inlined_call_operand.vmem [shape: f32[1,32], index: 6, kind: input, shape index: {}]
  %s7 = inlined_call_operand.hbm [shape: bf16[16,32], index: 7, kind: output, shape index: {0}]
  %s8 = inlined_call_operand.hbm [shape: bf16[16,32], index: 8, kind: output, shape index: {1}]
  %s9 = inlined_call_operand.hbm [shape: bf16[16,32], index: 9, kind: output, shape index: {2}]
  %10 = xla_tuple %s7, %s8, %s9
  %s11 = sld [smem:[#allocation0]]
  $region70: #{tpu_custom_call.1} parent=0
    _
  %s13 = ssub.s32 1, %s11
  %s14 = scalar_select 0, %s13, %s11
  $region1: #{tpu_custom_call.1} parent=0
    #allocation2 [shape = 'u8[4096]{0}', space=vmem, size = 0x1000, scoped, tag = 'input window, operand 0, single buffered']
    #allocation3 [shape = 's32[1]{0}', space=sflag, size = 0x4, scoped, tag = 'scoped memory for tpu_custom_call.1']
    #allocation4 [shape = 's32[1]{0}', space=sflag, size = 0x4, scoped, tag = 'scoped memory for tpu_custom_call.1']
    #allocation5 [shape = 'u8[8192]{0}', space=vmem, size = 0x2000, scoped, tag = 'input window, operand 1, single buffered']
    #allocation6 [shape = 's32[1]{0}', space=sflag, size = 0x4, scoped, tag = 'scoped memory for tpu_custom_call.1']
    #allocation7 [shape = 'u8[8192]{0}', space=vmem, size = 0x2000, scoped, tag = 'input window, operand 2, single buffered']
    #allocation8 [shape = 'u8[8192]{0}', space=vmem, size = 0x2000, scoped, tag = 'input window, operand 3, single buffered']
    #allocation9 [shape = 's32[1]{0}', space=sflag, size = 0x4, scoped, tag = 'scoped memory for tpu_custom_call.1']
    #allocation10 [shape = 'u8[4096]{0}', space=vmem, size = 0x1000, scoped, tag = 'output window, operand 0, single buffered']
    #allocation11 [shape = 'u8[4096]{0}', space=vmem, size = 0x1000, scoped, tag = 'output window, operand 1, single buffered']
    #allocation12 [shape = 's32[1]{0}', space=sflag, size = 0x4, scoped, tag = 'scoped memory for tpu_custom_call.1']
    #allocation13 [shape = 'u8[4096]{0}', space=vmem, size = 0x1000, scoped, tag = 'output window, operand 2, single buffered']
    %15 = vsyncpa [#allocation3], 0
    %16 = vsyncpa [#allocation6], 0
    %17 = vsyncpa [#allocation9], 0
    %18 = vsyncpa [#allocation4], 0
    %19 = vsyncpa [#allocation12], 0
    // Predicated region
    $region2: #{tpu_custom_call.1} parent=1 // pred_check
      _
    $region3: #{tpu_custom_call.1} parent=1 // pred_check_branch
      %21 = sbr.rel (0) target = $region5
    $region4: #{tpu_custom_call.1} parent=1 // pred_region
      %s23 = ssub.s32 128, 128
      %24 = vsyncadd [#allocation3], %s23
      %s25 = sshll.u32 [#allocation2], 4
      %s26 = int_to_ptr.vmem [resolvable:$true] %s25
      %31 = dma.hbm_to_vmem [thread:$0]  %s0, 128, %s26, [#allocation3], 64, 64, 4
    $region5: #{tpu_custom_call.1} parent=1 // pred_fallthru
      _
    // Predicated region
    $region6: #{tpu_custom_call.1} parent=1 // pred_check
      _
    $region7: #{tpu_custom_call.1} parent=1 // pred_check_branch
      %33 = sbr.rel (0) target = $region9
    $region8: #{tpu_custom_call.1} parent=1 // pred_region
      %s35 = ssub.s32 256, 256
      %36 = vsyncadd [#allocation6], %s35
      %s37 = sshll.u32 [#allocation5], 4
      %s38 = int_to_ptr.vmem [resolvable:$true] %s37
      %43 = dma.hbm_to_vmem [thread:$0]  %s1, 256, %s38, [#allocation6], 64, 64, 4
    $region9: #{tpu_custom_call.1} parent=1 // pred_fallthru
      _
    // Predicated region
    $region10: #{tpu_custom_call.1} parent=1 // pred_check
      _
    $region11: #{tpu_custom_call.1} parent=1 // pred_check_branch
      %45 = sbr.rel (0) target = $region13
    $region12: #{tpu_custom_call.1} parent=1 // pred_region
      %s47 = ssub.s32 256, 256
      %48 = vsyncadd [#allocation6], %s47
      %s49 = sshll.u32 [#allocation7], 4
      %s50 = int_to_ptr.vmem [resolvable:$true] %s49
      %55 = dma.hbm_to_vmem [thread:$0]  %s2, 256, %s50, [#allocation6], 64, 64, 4
    $region13: #{tpu_custom_call.1} parent=1 // pred_fallthru
      _
    // Predicated region
    $region14: #{tpu_custom_call.1} parent=1 // pred_check
      _
    $region15: #{tpu_custom_call.1} parent=1 // pred_check_branch
      %57 = sbr.rel (0) target = $region17
    $region16: #{tpu_custom_call.1} parent=1 // pred_region
      %s59 = ssub.s32 256, 256
      %60 = vsyncadd [#allocation9], %s59
      %s61 = sshll.u32 [#allocation8], 4
      %s62 = int_to_ptr.vmem [resolvable:$true] %s61
      %67 = dma.hbm_to_vmem [thread:$0]  %s3, 256, %s62, [#allocation9], 64, 64, 4
    $region17: #{tpu_custom_call.1} parent=1 // pred_fallthru
      _
    // Predicated region
    $region18: #{tpu_custom_call.1} parent=1 // pred_check
      _
    $region19: #{tpu_custom_call.1} parent=1 // pred_check_branch
      %69 = sbr.rel (0) target = $region21
    $region20: #{tpu_custom_call.1} parent=1 // pred_region
      _
    $region21: #{tpu_custom_call.1} parent=1 // pred_fallthru
      _
    // Predicated region
    $region22: #{tpu_custom_call.1} parent=1 // pred_check
      _
    $region23: #{tpu_custom_call.1} parent=1 // pred_check_branch
      %71 = sbr.rel (0) target = $region25
    $region24: #{tpu_custom_call.1} parent=1 // pred_region
      _
    $region25: #{tpu_custom_call.1} parent=1 // pred_fallthru
      _
    // Predicated region
    $region26: #{tpu_custom_call.1} parent=1 // pred_check
      _
    $region27: #{tpu_custom_call.1} parent=1 // pred_check_branch
      %73 = sbr.rel (0) target = $region29
    $region28: #{tpu_custom_call.1} parent=1 // pred_region
      _
    $region29: #{tpu_custom_call.1} parent=1 // pred_fallthru
      _
    // Predicated region
    $region30: #{tpu_custom_call.1} parent=1 // pred_check
      _
    $region31: #{tpu_custom_call.1} parent=1 // pred_check_branch
      %75 = sbr.rel (0) target = $region33
    $region32: #{tpu_custom_call.1} parent=1 // pred_region
      %76 = dma.done [#allocation3], 128
    $region33: #{tpu_custom_call.1} parent=1 // pred_fallthru
      _
    // Predicated region
    $region34: #{tpu_custom_call.1} parent=1 // pred_check
      _
    $region35: #{tpu_custom_call.1} parent=1 // pred_check_branch
      %78 = sbr.rel (0) target = $region37
    $region36: #{tpu_custom_call.1} parent=1 // pred_region
      %79 = dma.done [#allocation6], 256
    $region37: #{tpu_custom_call.1} parent=1 // pred_fallthru
      _
    // Predicated region
    $region38: #{tpu_custom_call.1} parent=1 // pred_check
      _
    $region39: #{tpu_custom_call.1} parent=1 // pred_check_branch
      %81 = sbr.rel (0) target = $region41
    $region40: #{tpu_custom_call.1} parent=1 // pred_region
      %82 = dma.done [#allocation6], 256
    $region41: #{tpu_custom_call.1} parent=1 // pred_fallthru
      _
    // Predicated region
    $region42: #{tpu_custom_call.1} parent=1 // pred_check
      _
    $region43: #{tpu_custom_call.1} parent=1 // pred_check_branch
      %84 = sbr.rel (0) target = $region45
    $region44: #{tpu_custom_call.1} parent=1 // pred_region
      %85 = dma.done [#allocation9], 256
    $region45: #{tpu_custom_call.1} parent=1 // pred_fallthru
      _
    %v87 = vld [vmem:[#allocation2] sm:$0xf]
    %v88 = vld [vmem:[#allocation2 + $0x4] sm:$0xf]
    %v89 = vld [vmem:[#allocation5] sm:$0xf]
    %v90 = vld [vmem:[#allocation5 + $0x4] sm:$0xf]
    %v91 = vld [vmem:[#allocation5 + $0x8] sm:$0xf]
    %v92 = vld [vmem:[#allocation5 + $0xc] sm:$0xf]
    %v93 = vld [vmem:[%s4] sm:$0x1]
    %v95 = vlaneseq
    %v96 = vshrl.u32 %v95, 7
    %v97 = vsub.s32 0, %v96
    %v98 = vrot.slane %v93, %v97
    %v102 = vunpack.c.l.b16 %v87
    %v103 = vunpack.c.l.b16 %v88
    %v104 = vpack.c.b16 %v103, %v102
    %v109 = vunpack.c.l.b16 %v89
    %v110 = vunpack.c.l.b16 %v90
    %v111 = vunpack.c.l.b16 %v91
    %v112 = vunpack.c.l.b16 %v92
    %v113 = vpack.c.b16 %v110, %v109
    %v114 = vpack.c.b16 %v112, %v111
    %vm117 = vcmask 261120
    %v119 = vsel %vm117, %v104, 0
    %121 = vmatprep.subr.bf16.mxu0 0
    %122 = vmatpush1.bf16.msra.mxu0 %v113
    %123 = vmatprep.subr.bf16.mxu0 0
    %124 = vmatpush1.bf16.msra.mxu0 %v114
    %125 = vmatprep.subr.bf16.mxu0 0
    %126 = vmatpush1.bf16.msra.mxu0 0
    %127 = vmatprep.subr.bf16.mxu0 0
    %128 = vmatpush1.bf16.msra.mxu0 0
    %129 = vmatprep.subr.bf16.mxu0 0
    %130 = vmatpush1.bf16.msra.mxu0 0
    %131 = vmatprep.subr.bf16.mxu0 0
    %132 = vmatpush1.bf16.msra.mxu0 0
    %133 = vmatprep.subr.bf16.mxu0 0
    %134 = vmatpush1.bf16.msra.mxu0 0
    %135 = vmatprep.subr.bf16.mxu0 0
    %136 = vmatpush1.bf16.msra.mxu0 0
    %137 = vmatprep.subr.bf16.mxu0 0
    %138 = vmatpush1.bf16.msra.mxu0 0
    %139 = vmatprep.subr.bf16.mxu0 0
    %140 = vmatpush1.bf16.msra.mxu0 0
    %141 = vmatprep.subr.bf16.mxu0 0
    %142 = vmatpush1.bf16.msra.mxu0 0
    %143 = vmatprep.subr.bf16.mxu0 0
    %144 = vmatpush1.bf16.msra.mxu0 0
    %145 = vmatprep.subr.bf16.mxu0 0
    %146 = vmatpush1.bf16.msra.mxu0 0
    %147 = vmatprep.subr.bf16.mxu0 0
    %148 = vmatpush1.bf16.msra.mxu0 0
    %149 = vmatprep.subr.bf16.mxu0 0
    %150 = vmatpush1.bf16.msra.mxu0 0
    %151 = vmatprep.subr.bf16.mxu0 0
    %152 = vmatpush1.bf16.msra.mxu0 0
    %153 = vmatprep.mubr.bf16.mxu0 0
    %154 = vmatmul.mubr.bf16.gmra.mrb[0].mxu0 %v119
    %v155 = vpop.f32.mrb[0].mxu0
    %v156 = vadd.f32 %v98, %v155
    %v157 = vpop.f32.mrb[0].mxu0
    %v158 = vpop.f32.mrb[0].mxu0
    %v159 = vadd.f32 %v98, %v158
    %v160 = vpop.f32.mrb[0].mxu0
    %161 = vdwg.mxu0
    %v162 = vpack.c.bf16 %v159, %v156
    %v164 = vunpack.c.l.b16 %v162
    %v165 = vunpack.c.h.b16 %v162
    %v166 = vpack.c.b16 %v164, %v164
    %v167 = vpack.c.b16 %v165, %v165
    %vm170 = vcmask 257024
    %171 = vst.msk [vmem:[#allocation10] sm:$0xf] %vm170, %v166
    %172 = vst.msk [vmem:[#allocation10 + $0x4] sm:$0xf] %vm170, %v167
    %v173 = vld [vmem:[#allocation7] sm:$0xf]
    %v174 = vld [vmem:[#allocation7 + $0x4] sm:$0xf]
    %v175 = vld [vmem:[#allocation7 + $0x8] sm:$0xf]
    %v176 = vld [vmem:[#allocation7 + $0xc] sm:$0xf]
    %v177 = vld [vmem:[%s5] sm:$0x1]
    %v179 = vlaneseq
    %v180 = vshrl.u32 %v179, 7
    %v181 = vsub.s32 0, %v180
    %v182 = vrot.slane %v177, %v181
    %v188 = vunpack.c.l.b16 %v173
    %v189 = vunpack.c.l.b16 %v174
    %v190 = vunpack.c.l.b16 %v175
    %v191 = vunpack.c.l.b16 %v176
    %v192 = vpack.c.b16 %v189, %v188
    %v193 = vpack.c.b16 %v191, %v190
    %196 = vmatprep.subr.bf16.mxu0 0
    %197 = vmatpush1.bf16.msra.mxu0 %v192
    %198 = vmatprep.subr.bf16.mxu0 0
    %199 = vmatpush1.bf16.msra.mxu0 %v193
    %200 = vmatprep.subr.bf16.mxu0 0
    %201 = vmatpush1.bf16.msra.mxu0 0
    %202 = vmatprep.subr.bf16.mxu0 0
    %203 = vmatpush1.bf16.msra.mxu0 0
    %204 = vmatprep.subr.bf16.mxu0 0
    %205 = vmatpush1.bf16.msra.mxu0 0
    %206 = vmatprep.subr.bf16.mxu0 0
    %207 = vmatpush1.bf16.msra.mxu0 0
    %208 = vmatprep.subr.bf16.mxu0 0
    %209 = vmatpush1.bf16.msra.mxu0 0
    %210 = vmatprep.subr.bf16.mxu0 0
    %211 = vmatpush1.bf16.msra.mxu0 0
    %212 = vmatprep.subr.bf16.mxu0 0
    %213 = vmatpush1.bf16.msra.mxu0 0
    %214 = vmatprep.subr.bf16.mxu0 0
    %215 = vmatpush1.bf16.msra.mxu0 0
    %216 = vmatprep.subr.bf16.mxu0 0
    %217 = vmatpush1.bf16.msra.mxu0 0
    %218 = vmatprep.subr.bf16.mxu0 0
    %219 = vmatpush1.bf16.msra.mxu0 0
    %220 = vmatprep.subr.bf16.mxu0 0
    %221 = vmatpush1.bf16.msra.mxu0 0
    %222 = vmatprep.subr.bf16.mxu0 0
    %223 = vmatpush1.bf16.msra.mxu0 0
    %224 = vmatprep.subr.bf16.mxu0 0
    %225 = vmatpush1.bf16.msra.mxu0 0
    %226 = vmatprep.subr.bf16.mxu0 0
    %227 = vmatpush1.bf16.msra.mxu0 0
    %228 = vmatprep.mubr.bf16.mxu0 0
    %229 = vmatmul.mubr.bf16.gmra.mrb[0].mxu0 %v119
    %v230 = vpop.f32.mrb[0].mxu0
    %v231 = vadd.f32 %v182, %v230
    %v232 = vpop.f32.mrb[0].mxu0
    %v233 = vpop.f32.mrb[0].mxu0
    %v234 = vadd.f32 %v182, %v233
    %v235 = vpop.f32.mrb[0].mxu0
    %236 = vdwg.mxu0
    %v237 = vpack.c.bf16 %v234, %v231
    %v239 = vunpack.c.l.b16 %v237
    %v240 = vunpack.c.h.b16 %v237
    %v241 = vpack.c.b16 %v239, %v239
    %v242 = vpack.c.b16 %v240, %v240
    %245 = vst.msk [vmem:[#allocation11] sm:$0xf] %vm170, %v241
    %246 = vst.msk [vmem:[#allocation11 + $0x4] sm:$0xf] %vm170, %v242
    %v247 = vld [vmem:[#allocation8] sm:$0xf]
    %v248 = vld [vmem:[#allocation8 + $0x4] sm:$0xf]
    %v249 = vld [vmem:[#allocation8 + $0x8] sm:$0xf]
    %v250 = vld [vmem:[#allocation8 + $0xc] sm:$0xf]
    %v251 = vld [vmem:[%s6] sm:$0x1]
    %v253 = vlaneseq
    %v254 = vshrl.u32 %v253, 7
    %v255 = vsub.s32 0, %v254
    %v256 = vrot.slane %v251, %v255
    %v262 = vunpack.c.l.b16 %v247
    %v263 = vunpack.c.l.b16 %v248
    %v264 = vunpack.c.l.b16 %v249
    %v265 = vunpack.c.l.b16 %v250
    %v266 = vpack.c.b16 %v263, %v262
    %v267 = vpack.c.b16 %v265, %v264
    %270 = vmatprep.subr.bf16.mxu0 0
    %271 = vmatpush1.bf16.msra.mxu0 %v266
    %272 = vmatprep.subr.bf16.mxu0 0
    %273 = vmatpush1.bf16.msra.mxu0 %v267
    %274 = vmatprep.subr.bf16.mxu0 0
    %275 = vmatpush1.bf16.msra.mxu0 0
    %276 = vmatprep.subr.bf16.mxu0 0
    %277 = vmatpush1.bf16.msra.mxu0 0
    %278 = vmatprep.subr.bf16.mxu0 0
    %279 = vmatpush1.bf16.msra.mxu0 0
    %280 = vmatprep.subr.bf16.mxu0 0
    %281 = vmatpush1.bf16.msra.mxu0 0
    %282 = vmatprep.subr.bf16.mxu0 0
    %283 = vmatpush1.bf16.msra.mxu0 0
    %284 = vmatprep.subr.bf16.mxu0 0
    %285 = vmatpush1.bf16.msra.mxu0 0
    %286 = vmatprep.subr.bf16.mxu0 0
    %287 = vmatpush1.bf16.msra.mxu0 0
    %288 = vmatprep.subr.bf16.mxu0 0
    %289 = vmatpush1.bf16.msra.mxu0 0
    %290 = vmatprep.subr.bf16.mxu0 0
    %291 = vmatpush1.bf16.msra.mxu0 0
    %292 = vmatprep.subr.bf16.mxu0 0
    %293 = vmatpush1.bf16.msra.mxu0 0
    %294 = vmatprep.subr.bf16.mxu0 0
    %295 = vmatpush1.bf16.msra.mxu0 0
    %296 = vmatprep.subr.bf16.mxu0 0
    %297 = vmatpush1.bf16.msra.mxu0 0
    %298 = vmatprep.subr.bf16.mxu0 0
    %299 = vmatpush1.bf16.msra.mxu0 0
    %300 = vmatprep.subr.bf16.mxu0 0
    %301 = vmatpush1.bf16.msra.mxu0 0
    %302 = vmatprep.mubr.bf16.mxu0 0
    %303 = vmatmul.mubr.bf16.gmra.mrb[0].mxu0 %v119
    %v304 = vpop.f32.mrb[0].mxu0
    %v305 = vadd.f32 %v256, %v304
    %v306 = vpop.f32.mrb[0].mxu0
    %v307 = vpop.f32.mrb[0].mxu0
    %v308 = vadd.f32 %v256, %v307
    %v309 = vpop.f32.mrb[0].mxu0
    %310 = vdwg.mxu0
    %v311 = vpack.c.bf16 %v308, %v305
    %v313 = vunpack.c.l.b16 %v311
    %v314 = vunpack.c.h.b16 %v311
    %v315 = vpack.c.b16 %v313, %v313
    %v316 = vpack.c.b16 %v314, %v314
    %319 = vst.msk [vmem:[#allocation13] sm:$0xf] %vm170, %v315
    %320 = vst.msk [vmem:[#allocation13 + $0x4] sm:$0xf] %vm170, %v316
    // Predicated region
    $region46: #{tpu_custom_call.1} parent=1 // pred_check
      _
    $region47: #{tpu_custom_call.1} parent=1 // pred_check_branch
      %322 = sbr.rel (0) target = $region49
    $region48: #{tpu_custom_call.1} parent=1 // pred_region
      %s324 = ssub.s32 128, 128
      %325 = vsyncadd [#allocation4], %s324
      %s326 = sshll.u32 [#allocation10], 4
      %s327 = int_to_ptr.vmem [resolvable:$true] %s326
      %332 = dma.vmem_to_hbm [thread:$0]  %s327, 128, %s7, [#allocation4], 64, 64, 4
    $region49: #{tpu_custom_call.1} parent=1 // pred_fallthru
      _
    // Predicated region
    $region50: #{tpu_custom_call.1} parent=1 // pred_check
      _
    $region51: #{tpu_custom_call.1} parent=1 // pred_check_branch
      %334 = sbr.rel (0) target = $region53
    $region52: #{tpu_custom_call.1} parent=1 // pred_region
      %s336 = ssub.s32 128, 128
      %337 = vsyncadd [#allocation12], %s336
      %s338 = sshll.u32 [#allocation11], 4
      %s339 = int_to_ptr.vmem [resolvable:$true] %s338
      %344 = dma.vmem_to_hbm [thread:$0]  %s339, 128, %s8, [#allocation12], 64, 64, 4
    $region53: #{tpu_custom_call.1} parent=1 // pred_fallthru
      _
    // Predicated region
    $region54: #{tpu_custom_call.1} parent=1 // pred_check
      _
    $region55: #{tpu_custom_call.1} parent=1 // pred_check_branch
      %346 = sbr.rel (0) target = $region57
    $region56: #{tpu_custom_call.1} parent=1 // pred_region
      %s348 = ssub.s32 128, 128
      %349 = vsyncadd [#allocation12], %s348
      %s350 = sshll.u32 [#allocation13], 4
      %s351 = int_to_ptr.vmem [resolvable:$true] %s350
      %356 = dma.vmem_to_hbm [thread:$0]  %s351, 128, %s9, [#allocation12], 64, 64, 4
    $region57: #{tpu_custom_call.1} parent=1 // pred_fallthru
      _
    // Predicated region
    $region58: #{tpu_custom_call.1} parent=1 // pred_check
      _
    $region59: #{tpu_custom_call.1} parent=1 // pred_check_branch
      %358 = sbr.rel (0) target = $region61
    $region60: #{tpu_custom_call.1} parent=1 // pred_region
      %359 = dma.done [#allocation4], 128
    $region61: #{tpu_custom_call.1} parent=1 // pred_fallthru
      _
    // Predicated region
    $region62: #{tpu_custom_call.1} parent=1 // pred_check
      _
    $region63: #{tpu_custom_call.1} parent=1 // pred_check_branch
      %361 = sbr.rel (0) target = $region65
    $region64: #{tpu_custom_call.1} parent=1 // pred_region
      %362 = dma.done [#allocation12], 128
    $region65: #{tpu_custom_call.1} parent=1 // pred_fallthru
      _
    // Predicated region
    $region66: #{tpu_custom_call.1} parent=1 // pred_check
      _
    $region67: #{tpu_custom_call.1} parent=1 // pred_check_branch
      %364 = sbr.rel (0) target = $region69
    $region68: #{tpu_custom_call.1} parent=1 // pred_region
      %365 = dma.done [#allocation12], 128
    $region69: #{tpu_custom_call.1} parent=1 // pred_fallthru
      _
    %366 = vsyncpa [#allocation3], 1
    %367 = vsyncpa [#allocation6], 1
    %368 = vsyncpa [#allocation9], 1
    %369 = vsyncpa [#allocation4], 1
    %370 = vsyncpa [#allocation12], 1

</llo_original>
